<compile_context>
chip_gen: v7x
topology: tpu7x:2x2x1
jax: 0.10.0
libtpu: 0.0.40
codegen_flags: <defaults>
</compile_context>

<pallas_src>
import functools

import jax
import jax.numpy as jnp
from jax.experimental import pallas as pl
from jax.experimental.pallas import tpu as pltpu


# ----------------------------------------------------------------------------
# helpers
# ----------------------------------------------------------------------------
def _round_up(x, m):
    return (x + m - 1) // m * m


def _buf_bytes(shape, dtype):
    """Conservative VMEM footprint of one (8/16, 128)-tiled 2-D buffer."""
    itemsize = jnp.dtype(dtype).itemsize
    sublane = 8 * max(1, 4 // itemsize)  # 8 for f32, 16 for bf16
    rows = _round_up(shape[-2], sublane)
    cols = _round_up(shape[-1], 128)
    return rows * cols * itemsize


# ----------------------------------------------------------------------------
# kernels
# ----------------------------------------------------------------------------
def _gcn_layer1_kernel(a_ref, x_ref, w1_ref, b1_ref, w2_ref, g_ref, acc_ref):
    """Row tile i of  G = relu((A @ X) @ W1 + b1) @ W2, reduced over k tiles of A."""
    k = pl.program_id(1)
    nk = pl.num_programs(1)
    tk = a_ref.shape[1]

    @pl.when(k == 0)
    def _():
        acc_ref[...] = jnp.zeros_like(acc_ref)

    row0 = pl.multiple_of(k * tk, tk)
    x_blk = x_ref[pl.ds(row0, tk), :]                            # (tk, Fp) bf16
    acc_ref[...] += jnp.dot(a_ref[...], x_blk,                   # (tm, Fp) f32 acc
                            preferred_element_type=jnp.float32)

    @pl.when(k == nk - 1)
    def _():
        # finalize: tiny, well-fed matmuls + bias + ReLU, all in f32 vregs
        h = jnp.dot(acc_ref[...], w1_ref[...],
                    preferred_element_type=jnp.float32) + b1_ref[...]
        h = jnp.maximum(h, 0.0)                                   # ReLU
        g = jnp.dot(h.astype(jnp.bfloat16), w2_ref[...],
                    preferred_element_type=jnp.float32)           # (tm, Cp)
        g_ref[...] = g.astype(g_ref.dtype)                        # lane-dense bf16 out


def _gcn_layer2_kernel(a_ref, g_ref, b2_ref, o_ref, acc_ref, *, num_classes):
    """Row tile i of  out = log_softmax(A @ G + b2), reduced over k tiles of A."""
    k = pl.program_id(1)
    nk = pl.num_programs(1)
    tk = a_ref.shape[1]

    @pl.when(k == 0)
    def _():
        acc_ref[...] = jnp.zeros_like(acc_ref)

    row0 = pl.multiple_of(k * tk, tk)
    g_blk = g_ref[pl.ds(row0, tk), :]                             # (tk, Cp) bf16
    acc_ref[...] += jnp.dot(a_ref[...], g_blk,                    # (tm, Cp) f32 acc
                            preferred_element_type=jnp.float32)

    @pl.when(k == nk - 1)
    def _():
        z = acc_ref[...] + b2_ref[...]
        cols = jax.lax.broadcasted_iota(jnp.int32, z.shape, 1)
        valid = cols < num_classes
        z = jnp.where(valid, z, -jnp.inf)                         # mask padded classes
        m = jnp.max(z, axis=1, keepdims=True)
        s = z - m
        e = jnp.where(valid, jnp.exp(s), 0.0)
        lse = jnp.log(jnp.sum(e, axis=1, keepdims=True))
        o_ref[...] = jnp.where(valid, s - lse, 0.0).astype(o_ref.dtype)


# ----------------------------------------------------------------------------
# wrapper
# ----------------------------------------------------------------------------
def gnn_pallas(a_hat, x, w1, b1, w2, b2, *, tile=256):
    """Two-layer GCN forward: log_softmax(A @ relu(A @ X @ W1 + b1) @ W2 + b2)."""
    n, f = x.shape
    h = w1.shape[1]
    c = w2.shape[1]

    # --- padded / tiled sizes (lane-dense classes, 8-padded features) ---
    if n <= tile:
        n_p = _round_up(n, 16)
        tm = tk = n_p
    else:
        n_p = _round_up(n, tile)
        tm = tk = tile
    f_p = _round_up(f, 8)
    c_p = _round_up(c, 128)
    grid = (n_p // tm, n_p // tk)

    # --- pad + cast operands (bf16 matmul operands, f32 accumulation) ---
    a_p = jnp.zeros((n_p, n_p), jnp.bfloat16).at[:n, :n].set(a_hat.astype(jnp.bfloat16))
    x_p = jnp.zeros((n_p, f_p), jnp.bfloat16).at[:n, :f].set(x.astype(jnp.bfloat16))
    w1_p = jnp.zeros((f_p, h), jnp.float32).at[:f, :].set(w1.astype(jnp.float32))
    b1_p = b1.astype(jnp.float32).reshape(1, h)
    w2_p = jnp.zeros((h, c_p), jnp.bfloat16).at[:, :c].set(w2.astype(jnp.bfloat16))
    b2_p = jnp.zeros((1, c_p), jnp.float32).at[:, :c].set(b2.astype(jnp.float32).reshape(1, c))

    # --- explicit scoped-VMEM budget (double buffers + resident operands + scratch) ---
    est1 = 2 * (_buf_bytes((tm, tk), jnp.bfloat16)
                + _buf_bytes((n_p, f_p), jnp.bfloat16)
                + _buf_bytes((f_p, h), jnp.float32)
                + _buf_bytes((1, h), jnp.float32)
                + _buf_bytes((h, c_p), jnp.bfloat16)
                + _buf_bytes((tm, c_p), jnp.bfloat16)) + _buf_bytes((tm, f_p), jnp.float32)
    est2 = 2 * (_buf_bytes((tm, tk), jnp.bfloat16)
                + _buf_bytes((n_p, c_p), jnp.bfloat16)
                + _buf_bytes((1, c_p), jnp.float32)
                + _buf_bytes((tm, c_p), jnp.float32)) + _buf_bytes((tm, c_p), jnp.float32)
    vmem_limit = int(min(max(2 * max(est1, est2), 16 * 2**20), 48 * 2**20))

    cparams = pltpu.CompilerParams(
        dimension_semantics=("parallel", "arbitrary"),
        vmem_limit_bytes=vmem_limit,
    )

    # --- layer 1: G = relu((A @ X) @ W1 + b1) @ W2  (bf16, lane-dense Cp output) ---
    g = pl.pallas_call(
        _gcn_layer1_kernel,
        out_shape=jax.ShapeDtypeStruct((n_p, c_p), jnp.bfloat16),
        grid=grid,
        in_specs=[
            pl.BlockSpec((tm, tk), lambda i, k: (i, k)),      # A tile, streamed
            pl.BlockSpec((n_p, f_p), lambda i, k: (0, 0)),    # X, VMEM-resident
            pl.BlockSpec((f_p, h), lambda i, k: (0, 0)),      # W1
            pl.BlockSpec((1, h), lambda i, k: (0, 0)),        # b1
            pl.BlockSpec((h, c_p), lambda i, k: (0, 0)),      # W2
        ],
        out_specs=pl.BlockSpec((tm, c_p), lambda i, k: (i, 0)),
        scratch_shapes=[pltpu.VMEM((tm, f_p), jnp.float32)],
        compiler_params=cparams,
    )(a_p, x_p, w1_p, b1_p, w2_p)

    # --- layer 2: out = log_softmax(A @ G + b2)  (padded classes masked) ---
    out_p = pl.pallas_call(
        functools.partial(_gcn_layer2_kernel, num_classes=c),
        out_shape=jax.ShapeDtypeStruct((n_p, c_p), jnp.float32),
        grid=grid,
        in_specs=[
            pl.BlockSpec((tm, tk), lambda i, k: (i, k)),      # A tile, streamed
            pl.BlockSpec((n_p, c_p), lambda i, k: (0, 0)),    # G, VMEM-resident
            pl.BlockSpec((1, c_p), lambda i, k: (0, 0)),      # b2
        ],
        out_specs=pl.BlockSpec((tm, c_p), lambda i, k: (i, 0)),
        scratch_shapes=[pltpu.VMEM((tm, c_p), jnp.float32)],
        compiler_params=cparams,
    )(a_p, g, b2_p)

    return out_p[:n, :c]


# ----------------------------------------------------------------------------
# graph glue (plain JAX): dense D^-1/2 (A + I) D^-1/2 matching PyG GCNConv gcn_norm
# ----------------------------------------------------------------------------
def build_normalized_adjacency(edge_index, num_nodes):
    src = edge_index[0]   # sender accounts
    dst = edge_index[1]   # receiver accounts
    a = jnp.zeros((num_nodes, num_nodes), dtype=jnp.float32)
    # A[i, j] = 1 iff edge j -> i (message from j aggregated into i)
    a = a.at[dst, src].set(1.0)
    a = a + jnp.eye(num_nodes, dtype=jnp.float32)      # add self loops
    deg = jnp.sum(a, axis=1)                           # target degrees incl. self loops
    dinv = jnp.where(deg > 0, 1.0 / jnp.sqrt(deg), 0.0)
    return a * dinv[:, None] * dinv[None, :]


def glorot(key, shape):
    fan_in, fan_out = shape
    limit = jnp.sqrt(6.0 / (fan_in + fan_out))
    return jax.random.uniform(key, shape, jnp.float32, -limit, limit)


if __name__ == "__main__":
    # Small synthetic shapes consistent with the module:
    # node_features has 5 columns -> num_features = 5
    num_nodes = 16
    num_features = 5
    hidden_dim = 32
    num_classes = 4
    num_edges = 40

    key = jax.random.PRNGKey(0)
    k_edges, k_x, k_w1, k_w2 = jax.random.split(key, 4)

    # Deterministic synthetic edge_index [2, E] (sender -> receiver accounts).
    edge_index = jax.random.randint(k_edges, (2, num_edges), 0, num_nodes, dtype=jnp.int32)

    # Node features (original script uses zeros; random values give a meaningful check).
    x = jax.random.normal(k_x, (num_nodes, num_features), dtype=jnp.float32)

    # GCNConv params: glorot weights, zero biases (PyG default init).
    w1 = glorot(k_w1, (num_features, hidden_dim))
    b1 = jnp.zeros((1, hidden_dim), dtype=jnp.float32)
    w2 = glorot(k_w2, (hidden_dim, num_classes))
    b2 = jnp.zeros((1, num_classes), dtype=jnp.float32)

    a_hat = build_normalized_adjacency(edge_index, num_nodes)

    out = gnn_pallas(a_hat, x, w1, b1, w2, b2)
    out = jax.block_until_ready(out)
    assert out.shape == (num_nodes, num_classes)

    # --- tight check vs a reference that applies the same bf16 operand casts ---
    bf = lambda t: t.astype(jnp.bfloat16).astype(jnp.float32)
    a_bf, x_bf, w2_bf = bf(a_hat), bf(x), bf(w2)
    h2 = jnp.maximum((a_bf @ x_bf) @ w1 + b1, 0.0)
    g2 = bf(bf(h2) @ w2_bf)
    ref_bf16 = jax.nn.log_softmax(a_bf @ g2 + b2, axis=1)
    assert jnp.allclose(out, ref_bf16, atol=2e-3), float(jnp.max(jnp.abs(out - ref_bf16)))

    # --- loose fidelity check vs the pure-f32 module semantics ---
    h_ref = jnp.maximum(a_hat @ (x @ w1) + b1, 0.0)
    z_ref = a_hat @ (h_ref @ w2) + b2
    ref_f32 = jax.nn.log_softmax(z_ref, axis=1)
    assert jnp.allclose(out, ref_f32, atol=1e-1), float(jnp.max(jnp.abs(out - ref_f32)))

    # log_softmax rows must exponentiate-sum to 1
    assert jnp.allclose(jnp.sum(jnp.exp(out), axis=1), 1.0, atol=1e-3)

    print("KERNEL_OK")
</pallas_src>

<mosaic_0001>
module attributes {stable_mosaic.version = 11 : i64} {
  func.func @_gcn_layer1_kernel(%arg0: i32, %arg1: i32, %arg2: memref<16x16xbf16, #tpu.memory_space<vmem>>, %arg3: memref<16x8xbf16, #tpu.memory_space<vmem>>, %arg4: memref<8x32xf32, #tpu.memory_space<vmem>>, %arg5: memref<1x32xf32, #tpu.memory_space<vmem>>, %arg6: memref<32x128xbf16, #tpu.memory_space<vmem>>, %arg7: memref<16x128xbf16, #tpu.memory_space<vmem>>, %arg8: memref<16x8xf32, #tpu.memory_space<vmem>>) attributes {dimension_semantics = [#tpu.dimension_semantics<parallel>, #tpu.dimension_semantics<arbitrary>], iteration_bounds = array<i64: 1, 1>, scalar_prefetch = 0 : i64, scratch_operands = 1 : i64, tpu.core_type = #tpu.core_type<tc>, window_params = [{transform_indices = @transform_0, window_bounds = array<i64: 16, 16>}, {pipeline_mode = #tpu.pipeline_mode<synchronous>, transform_indices = @transform_1, window_bounds = array<i64: 16, 8>}, {pipeline_mode = #tpu.pipeline_mode<synchronous>, transform_indices = @transform_2, window_bounds = array<i64: 8, 32>}, {pipeline_mode = #tpu.pipeline_mode<synchronous>, transform_indices = @transform_3, window_bounds = array<i64: 1, 32>}, {pipeline_mode = #tpu.pipeline_mode<synchronous>, transform_indices = @transform_4, window_bounds = array<i64: 32, 128>}, {transform_indices = @transform_5, window_bounds = array<i64: 16, 128>}]} {
    %c0_i32 = arith.constant 0 : i32
    %0 = arith.cmpi eq, %arg1, %c0_i32 : i32
    %1 = arith.extui %0 : i1 to i32
    %c0_i32_0 = arith.constant 0 : i32
    %2 = arith.cmpi ne, %1, %c0_i32_0 : i32
    scf.if %2 {
      %cst_9 = arith.constant 0.000000e+00 : f32
      %15 = vector.broadcast %cst_9 : f32 to vector<16x8xf32>
      %c0_10 = arith.constant 0 : index
      %c0_11 = arith.constant 0 : index
      %16 = vector.load %arg8[%c0_10, %c0_11] : memref<16x8xf32, #tpu.memory_space<vmem>>, vector<16x8xf32>
      tpu.vector_store %arg8[%c0_10, %c0_11], %15 {strides = array<i32>} : memref<16x8xf32, #tpu.memory_space<vmem>>, vector<16x8xf32>,
    } else {
    }
    %c16_i32 = arith.constant 16 : i32
    %3 = arith.muli %arg1, %c16_i32 : i32
    %4 = tpu.assume_multiple %3, 16 : i32
    %5 = arith.index_cast %4 : i32 to index
    %c0 = arith.constant 0 : index
    %6 = vector.load %arg3[%5, %c0] : memref<16x8xbf16, #tpu.memory_space<vmem>>, vector<16x8xbf16>
    %c0_1 = arith.constant 0 : index
    %c0_2 = arith.constant 0 : index
    %7 = vector.load %arg8[%c0_1, %c0_2] : memref<16x8xf32, #tpu.memory_space<vmem>>, vector<16x8xf32>
    %c0_3 = arith.constant 0 : index
    %c0_4 = arith.constant 0 : index
    %8 = vector.load %arg2[%c0_3, %c0_4] : memref<16x16xbf16, #tpu.memory_space<vmem>>, vector<16x16xbf16>
    %cst = arith.constant dense<0.000000e+00> : vector<16x8xf32>
    %9 = tpu.matmul %8, %6, %cst {dimension_numbers = #tpu.dot_dimension_numbers<[1], [0], [0], [1], [0, 0, 1, 1], [], []>} : vector<16x16xbf16>, vector<16x8xbf16>, vector<16x8xf32> -> vector<16x8xf32>
    %10 = arith.addf %7, %9 : vector<16x8xf32>
    %c0_5 = arith.constant 0 : index
    %c0_6 = arith.constant 0 : index
    %11 = vector.load %arg8[%c0_5, %c0_6] : memref<16x8xf32, #tpu.memory_space<vmem>>, vector<16x8xf32>
    tpu.vector_store %arg8[%c0_5, %c0_6], %10 {strides = array<i32>} : memref<16x8xf32, #tpu.memory_space<vmem>>, vector<16x8xf32>,
    %c0_i32_7 = arith.constant 0 : i32
    %12 = arith.cmpi eq, %arg1, %c0_i32_7 : i32
    %13 = arith.extui %12 : i1 to i32
    %c0_i32_8 = arith.constant 0 : i32
    %14 = arith.cmpi ne, %13, %c0_i32_8 : i32
    scf.if %14 {
      %c0_9 = arith.constant 0 : index
      %c0_10 = arith.constant 0 : index
      %15 = vector.load %arg8[%c0_9, %c0_10] : memref<16x8xf32, #tpu.memory_space<vmem>>, vector<16x8xf32>
      %c0_11 = arith.constant 0 : index
      %c0_12 = arith.constant 0 : index
      %16 = vector.load %arg4[%c0_11, %c0_12] : memref<8x32xf32, #tpu.memory_space<vmem>>, vector<8x32xf32>
      %cst_13 = arith.constant dense<0.000000e+00> : vector<16x32xf32>
      %17 = tpu.matmul %15, %16, %cst_13 {dimension_numbers = #tpu.dot_dimension_numbers<[1], [0], [0], [1], [0, 0, 1, 1], [], []>} : vector<16x8xf32>, vector<8x32xf32>, vector<16x32xf32> -> vector<16x32xf32>
      %c0_14 = arith.constant 0 : index
      %c0_15 = arith.constant 0 : index
      %18 = vector.load %arg5[%c0_14, %c0_15] : memref<1x32xf32, #tpu.memory_space<vmem>>, vector<1x32xf32>
      %19 = vector.broadcast %18 : vector<1x32xf32> to vector<16x32xf32>
      %20 = arith.addf %17, %19 : vector<16x32xf32>
      %cst_16 = arith.constant 0.000000e+00 : f32
      %21 = vector.broadcast %cst_16 : f32 to vector<16x32xf32>
      %22 = arith.maximumf %20, %21 : vector<16x32xf32>
      %23 = arith.truncf %22 : vector<16x32xf32> to vector<16x32xbf16>
      %c0_17 = arith.constant 0 : index
      %c0_18 = arith.constant 0 : index
      %24 = vector.load %arg6[%c0_17, %c0_18] : memref<32x128xbf16, #tpu.memory_space<vmem>>, vector<32x128xbf16>
      %cst_19 = arith.constant dense<0.000000e+00> : vector<16x128xf32>
      %25 = tpu.matmul %23, %24, %cst_19 {dimension_numbers = #tpu.dot_dimension_numbers<[1], [0], [0], [1], [0, 0, 1, 1], [], []>} : vector<16x32xbf16>, vector<32x128xbf16>, vector<16x128xf32> -> vector<16x128xf32>
      %26 = arith.truncf %25 : vector<16x128xf32> to vector<16x128xbf16>
      %c0_20 = arith.constant 0 : index
      %c0_21 = arith.constant 0 : index
      %27 = vector.load %arg7[%c0_20, %c0_21] : memref<16x128xbf16, #tpu.memory_space<vmem>>, vector<16x128xbf16>
      tpu.vector_store %arg7[%c0_20, %c0_21], %26 {strides = array<i32>} : memref<16x128xbf16, #tpu.memory_space<vmem>>, vector<16x128xbf16>,
    } else {
    }
    return
  }
  func.func @transform_0(%arg0: i32, %arg1: i32) -> (i32, i32) {
    %c0_i32 = arith.constant 0 : i32
    return %arg0, %arg1 : i32, i32
  }
  func.func @transform_1(%arg0: i32, %arg1: i32) -> (i32, i32) {
    %c0_i32 = arith.constant 0 : i32
    %c0_i32_0 = arith.constant 0 : i32
    %c0_i32_1 = arith.constant 0 : i32
    return %c0_i32, %c0_i32_0 : i32, i32
  }
  func.func @transform_2(%arg0: i32, %arg1: i32) -> (i32, i32) {
    %c0_i32 = arith.constant 0 : i32
    %c0_i32_0 = arith.constant 0 : i32
    %c0_i32_1 = arith.constant 0 : i32
    return %c0_i32, %c0_i32_0 : i32, i32
  }
  func.func @transform_3(%arg0: i32, %arg1: i32) -> (i32, i32) {
    %c0_i32 = arith.constant 0 : i32
    %c0_i32_0 = arith.constant 0 : i32
    %c0_i32_1 = arith.constant 0 : i32
    return %c0_i32, %c0_i32_0 : i32, i32
  }
  func.func @transform_4(%arg0: i32, %arg1: i32) -> (i32, i32) {
    %c0_i32 = arith.constant 0 : i32
    %c0_i32_0 = arith.constant 0 : i32
    %c0_i32_1 = arith.constant 0 : i32
    return %c0_i32, %c0_i32_0 : i32, i32
  }
  func.func @transform_5(%arg0: i32, %arg1: i32) -> (i32, i32) {
    %c0_i32 = arith.constant 0 : i32
    %c0_i32_0 = arith.constant 0 : i32
    return %arg0, %c0_i32 : i32, i32
  }
}

</mosaic_0001>

<llo_original>
// kernel: tpu_custom_call.1
$region0: #{tpu_custom_call.1}
  #allocation0 [shape = 'u32[]', space=smem, size = 0x4, offset = 0x4, fixed_abs, tag = 'smem constant byte address 0x4 - core index']
  #allocation1 [shape = 'u32[144,128]{1,0:T(1,128)}', space=vmem, size = 0x12000, scoped, tag = 'internal scratch']
  #allocation2 [shape = 'f32[16,8]{1,0:T(8,128)}', space=vmem, size = 0x2000, scoped, tag = 'scratch operand']
  %s0 = inlined_call_operand.vmem [shape: bf16[16,16], index: 0, kind: input, shape index: {}]
  %s1 = inlined_call_operand.vmem [shape: bf16[16,8], index: 1, kind: input, shape index: {}]
  %s2 = inlined_call_operand.hbm [shape: f32[8,32], index: 2, kind: input, shape index: {}]
  %s3 = inlined_call_operand.vmem [shape: f32[1,32], index: 3, kind: input, shape index: {}]
  %s4 = inlined_call_operand.vmem [shape: bf16[32,128], index: 4, kind: input, shape index: {}]
  %s5 = inlined_call_operand.hbm [shape: bf16[16,128], index: 5, kind: output, shape index: {}]
  %s6 = sld [smem:[#allocation0]]
  $region42: #{tpu_custom_call.1} parent=0
    _
  %s8 = ssub.s32 1, %s6
  %s9 = scalar_select 0, %s8, %s6
  $region1: #{tpu_custom_call.1} parent=0
    #allocation3 [shape = 'u8[4096]{0}', space=vmem, size = 0x1000, scoped, tag = 'input window, operand 2, single buffered']
    #allocation4 [shape = 's32[1]{0}', space=sflag, size = 0x4, scoped, tag = 'scoped memory for tpu_custom_call.1']
    #allocation5 [shape = 's32[1]{0}', space=sflag, size = 0x4, scoped, tag = 'scoped memory for tpu_custom_call.1']
    #allocation6 [shape = 'u8[4096]{0}', space=vmem, size = 0x1000, scoped, tag = 'output window, operand 0, single buffered']
    %10 = vsyncpa [#allocation4], 0
    %11 = vsyncpa [#allocation5], 0
    // Predicated region
    $region2: #{tpu_custom_call.1} parent=1 // pred_check
      _
    $region3: #{tpu_custom_call.1} parent=1 // pred_check_branch
      %13 = sbr.rel (0) target = $region5
    $region4: #{tpu_custom_call.1} parent=1 // pred_region
      _
    $region5: #{tpu_custom_call.1} parent=1 // pred_fallthru
      _
    // Predicated region
    $region6: #{tpu_custom_call.1} parent=1 // pred_check
      _
    $region7: #{tpu_custom_call.1} parent=1 // pred_check_branch
      %15 = sbr.rel (0) target = $region9
    $region8: #{tpu_custom_call.1} parent=1 // pred_region
      _
    $region9: #{tpu_custom_call.1} parent=1 // pred_fallthru
      _
    // Predicated region
    $region10: #{tpu_custom_call.1} parent=1 // pred_check
      _
    $region11: #{tpu_custom_call.1} parent=1 // pred_check_branch
      %17 = sbr.rel (0) target = $region13
    $region12: #{tpu_custom_call.1} parent=1 // pred_region
      %s19 = ssub.s32 128, 128
      %20 = vsyncadd [#allocation4], %s19
      %s22 = sshll.u32 [#allocation3], 4
      %s23 = int_to_ptr.vmem [resolvable:$true] %s22
      %25 = dma.hbm_to_vmem [thread:$0]  %s2, 128, %s23, [#allocation4]
    $region13: #{tpu_custom_call.1} parent=1 // pred_fallthru
      _
    // Predicated region
    $region14: #{tpu_custom_call.1} parent=1 // pred_check
      _
    $region15: #{tpu_custom_call.1} parent=1 // pred_check_branch
      %27 = sbr.rel (0) target = $region17
    $region16: #{tpu_custom_call.1} parent=1 // pred_region
      _
    $region17: #{tpu_custom_call.1} parent=1 // pred_fallthru
      _
    // Predicated region
    $region18: #{tpu_custom_call.1} parent=1 // pred_check
      _
    $region19: #{tpu_custom_call.1} parent=1 // pred_check_branch
      %29 = sbr.rel (0) target = $region21
    $region20: #{tpu_custom_call.1} parent=1 // pred_region
      _
    $region21: #{tpu_custom_call.1} parent=1 // pred_fallthru
      _
    // Predicated region
    $region22: #{tpu_custom_call.1} parent=1 // pred_check
      _
    $region23: #{tpu_custom_call.1} parent=1 // pred_check_branch
      %31 = sbr.rel (0) target = $region25
    $region24: #{tpu_custom_call.1} parent=1 // pred_region
      %32 = dma.done [#allocation4], 128
    $region25: #{tpu_custom_call.1} parent=1 // pred_fallthru
      _
    %p34 = scmp.eq.s32.totalorder 0, 0
    // Predicated region
    $region26: #{tpu_custom_call.1} parent=1 // pred_check
      %p35 = pneg %p34
    $region27: #{tpu_custom_call.1} parent=1 // pred_check_branch
      %37 = sbr.rel (%p35) target = $region29
    $region28: #{tpu_custom_call.1} parent=1 // pred_region
      %vm38 = vcmask 64512
      %39 = vst.msk [vmem:[#allocation2] sm:$0xff] %vm38, 0.0
      %40 = vst.msk [vmem:[#allocation2 + $0x8] sm:$0xff] %vm38, 0.0
    $region29: #{tpu_custom_call.1} parent=1 // pred_fallthru
      _
    %s41 = smul.u32 0, 16
    %s42 = sshra.s32 %s41, 3
    %s43 = sand.u32 %s41, 7
    %s44 = smul.addr %s42, 4
    %s45 = scalar_lea.vmem %s1, %s44
    %v46 = vld [vmem:[%s45] sm:$0xf]
    %v47 = vld [vmem:[%s45 + $0x4] sm:$0xf]
    %v48 = vld [vmem:[#allocation2] sm:$0xff]
    %v49 = vld [vmem:[#allocation2 + $0x8] sm:$0xff]
    %v50 = vld [vmem:[%s0] sm:$0xf]
    %v51 = vld [vmem:[%s0 + $0x4] sm:$0xf]
    %v54 = vunpack.c.l.b16 %v50
    %v55 = vunpack.c.l.b16 %v51
    %v56 = vpack.c.b16 %v55, %v54
    %v59 = vunpack.c.l.b16 %v46
    %v60 = vunpack.c.l.b16 %v47
    %v61 = vpack.c.b16 %v60, %v59
    %vm63 = vcmask 130048
    %v65 = vsel %vm63, %v56, 0
    %67 = vmatprep.subr.bf16.mxu0 0
    %68 = vmatpush1.bf16.msra.mxu0 %v61
    %69 = vmatprep.subr.bf16.mxu0 0
    %70 = vmatpush1.bf16.msra.mxu0 0
    %71 = vmatprep.subr.bf16.mxu0 0
    %72 = vmatpush1.bf16.msra.mxu0 0
    %73 = vmatprep.subr.bf16.mxu0 0
    %74 = vmatpush1.bf16.msra.mxu0 0
    %75 = vmatprep.subr.bf16.mxu0 0
    %76 = vmatpush1.bf16.msra.mxu0 0
    %77 = vmatprep.subr.bf16.mxu0 0
    %78 = vmatpush1.bf16.msra.mxu0 0
    %79 = vmatprep.subr.bf16.mxu0 0
    %80 = vmatpush1.bf16.msra.mxu0 0
    %81 = vmatprep.subr.bf16.mxu0 0
    %82 = vmatpush1.bf16.msra.mxu0 0
    %83 = vmatprep.subr.bf16.mxu0 0
    %84 = vmatpush1.bf16.msra.mxu0 0
    %85 = vmatprep.subr.bf16.mxu0 0
    %86 = vmatpush1.bf16.msra.mxu0 0
    %87 = vmatprep.subr.bf16.mxu0 0
    %88 = vmatpush1.bf16.msra.mxu0 0
    %89 = vmatprep.subr.bf16.mxu0 0
    %90 = vmatpush1.bf16.msra.mxu0 0
    %91 = vmatprep.subr.bf16.mxu0 0
    %92 = vmatpush1.bf16.msra.mxu0 0
    %93 = vmatprep.subr.bf16.mxu0 0
    %94 = vmatpush1.bf16.msra.mxu0 0
    %95 = vmatprep.subr.bf16.mxu0 0
    %96 = vmatpush1.bf16.msra.mxu0 0
    %97 = vmatprep.subr.bf16.mxu0 0
    %98 = vmatpush1.bf16.msra.mxu0 0
    %99 = vmatprep.mubr.bf16.mxu0 0
    %100 = vmatmul.mubr.bf16.gmra.mrb[0].mxu0 %v65
    %v101 = vpop.f32.mrb[0].mxu0
    %v102 = vadd.f32 0.0, %v101
    %v103 = vpop.f32.mrb[0].mxu0
    %v104 = vpop.f32.mrb[0].mxu0
    %v105 = vadd.f32 0.0, %v104
    %v106 = vpop.f32.mrb[0].mxu0
    %107 = vdwg.mxu0
    %v108 = vadd.f32 %v48, %v102
    %v109 = vadd.f32 %v49, %v105
    %vm110 = vcmask 64512
    %111 = vst.msk [vmem:[#allocation2] sm:$0xff] %vm110, %v108
    %112 = vst.msk [vmem:[#allocation2 + $0x8] sm:$0xff] %vm110, %v109
    // Predicated region
    $region30: #{tpu_custom_call.1} parent=1 // pred_check
      %p113 = pneg %p34
    $region31: #{tpu_custom_call.1} parent=1 // pred_check_branch
      %115 = sbr.rel (%p113) target = $region33
    $region32: #{tpu_custom_call.1} parent=1 // pred_region
      %v116 = vld [vmem:[#allocation2] sm:$0xff]
      %v117 = vld [vmem:[#allocation2 + $0x8] sm:$0xff]
      %v118 = vld [vmem:[#allocation3] sm:$0xff]
      %v119 = vld [vmem:[%s3] sm:$0x1]
      %v121 = vlaneseq
      %v122 = vshrl.u32 %v121, 7
      %v123 = vsub.s32 0, %v122
      %v124 = vrot.slane %v119, %v123
      %v127 = vsel %vm110, %v116, 0
      %v130 = vsel %vm110, %v117, 0
      %132 = vmatprep.subr.mxu0 0.0
      %133 = vmatpush1.msra.mxu0 %v118
      %134 = vmatprep.subr.mxu0 0.0
      %135 = vmatpush1.msra.mxu0 0.0
      %136 = vmatprep.subr.mxu0 0.0
      %137 = vmatpush1.msra.mxu0 0.0
      %138 = vmatprep.subr.mxu0 0.0
      %139 = vmatpush1.msra.mxu0 0.0
      %140 = vmatprep.subr.mxu0 0.0
      %141 = vmatpush1.msra.mxu0 0.0
      %142 = vmatprep.subr.mxu0 0.0
      %143 = vmatpush1.msra.mxu0 0.0
      %144 = vmatprep.subr.mxu0 0.0
      %145 = vmatpush1.msra.mxu0 0.0
      %146 = vmatprep.subr.mxu0 0.0
      %147 = vmatpush1.msra.mxu0 0.0
      %148 = vmatprep.subr.mxu0 0.0
      %149 = vmatpush1.msra.mxu0 0.0
      %150 = vmatprep.subr.mxu0 0.0
      %151 = vmatpush1.msra.mxu0 0.0
      %152 = vmatprep.subr.mxu0 0.0
      %153 = vmatpush1.msra.mxu0 0.0
      %154 = vmatprep.subr.mxu0 0.0
      %155 = vmatpush1.msra.mxu0 0.0
      %156 = vmatprep.subr.mxu0 0.0
      %157 = vmatpush1.msra.mxu0 0.0
      %158 = vmatprep.subr.mxu0 0.0
      %159 = vmatpush1.msra.mxu0 0.0
      %160 = vmatprep.subr.mxu0 0.0
      %161 = vmatpush1.msra.mxu0 0.0
      %162 = vmatprep.subr.mxu0 0.0
      %163 = vmatpush1.msra.mxu0 0.0
      %164 = vmatprep.subr.mxu0 0.0
      %165 = vmatpush1.msra.mxu0 0.0
      %166 = vmatprep.subr.mxu0 0.0
      %167 = vmatpush1.msra.mxu0 0.0
      %168 = vmatprep.subr.mxu0 0.0
      %169 = vmatpush1.msra.mxu0 0.0
      %170 = vmatprep.subr.mxu0 0.0
      %171 = vmatpush1.msra.mxu0 0.0
      %172 = vmatprep.subr.mxu0 0.0
      %173 = vmatpush1.msra.mxu0 0.0
      %174 = vmatprep.subr.mxu0 0.0
      %175 = vmatpush1.msra.mxu0 0.0
      %176 = vmatprep.subr.mxu0 0.0
      %177 = vmatpush1.msra.mxu0 0.0
      %178 = vmatprep.subr.mxu0 0.0
      %179 = vmatpush1.msra.mxu0 0.0
      %180 = vmatprep.subr.mxu0 0.0
      %181 = vmatpush1.msra.mxu0 0.0
      %182 = vmatprep.subr.mxu0 0.0
      %183 = vmatpush1.msra.mxu0 0.0
      %184 = vmatprep.subr.mxu0 0.0
      %185 = vmatpush1.msra.mxu0 0.0
      %186 = vmatprep.subr.mxu0 0.0
      %187 = vmatpush1.msra.mxu0 0.0
      %188 = vmatprep.subr.mxu0 0.0
      %189 = vmatpush1.msra.mxu0 0.0
      %190 = vmatprep.subr.mxu0 0.0
      %191 = vmatpush1.msra.mxu0 0.0
      %192 = vmatprep.subr.mxu0 0.0
      %193 = vmatpush1.msra.mxu0 0.0
      %194 = vmatprep.subr.mxu0 0.0
      %195 = vmatpush1.msra.mxu0 0.0
      %196 = vmatprep.mubr.f32.mxu0 0.0
      %197 = vmatmul.mubr.f32.gmra.mrb[0].mxu0 %v127
      %v198 = vpop.f32.mrb[0].mxu0
      %v199 = vadd.f32 %v124, %v198
      %v200 = vpop.f32.mrb[0].mxu0
      %201 = vmatprep.mubr.f32.mxu0 0.0
      %202 = vmatmul.mubr.f32.gmra.mrb[0].mxu0 %v130
      %v203 = vpop.f32.mrb[0].mxu0
      %v204 = vadd.f32 %v124, %v203
      %v205 = vpop.f32.mrb[0].mxu0
      %206 = vdwg.mxu0
      %v207 = vmax.f32 %v199, 0.0
      %v208 = vmax.f32 %v204, 0.0
      %v209 = vpack.c.bf16 %v208, %v207
      %v210 = vld [vmem:[%s4] sm:$0xf]
      %v211 = vld [vmem:[%s4 + $0x4] sm:$0xf]
      %v212 = vld [vmem:[%s4 + $0x8] sm:$0xf]
      %v213 = vld [vmem:[%s4 + $0xc] sm:$0xf]
      %v218 = vunpack.c.l.b16 %v210
      %v219 = vunpack.c.l.b16 %v211
      %v220 = vunpack.c.l.b16 %v212
      %v221 = vunpack.c.l.b16 %v213
      %v222 = vpack.c.b16 %v219, %v218
      %v223 = vpack.c.b16 %v221, %v220
      %vm226 = vcmask 261120
      %v228 = vsel %vm226, %v209, 0
      %230 = vmatprep.subr.bf16.mxu0 0
      %231 = vmatpush1.bf16.msra.mxu0 %v222
      %232 = vmatprep.subr.bf16.mxu0 0
      %233 = vmatpush1.bf16.msra.mxu0 %v223
      %234 = vmatprep.subr.bf16.mxu0 0
      %235 = vmatpush1.bf16.msra.mxu0 0
      %236 = vmatprep.subr.bf16.mxu0 0
      %237 = vmatpush1.bf16.msra.mxu0 0
      %238 = vmatprep.subr.bf16.mxu0 0
      %239 = vmatpush1.bf16.msra.mxu0 0
      %240 = vmatprep.subr.bf16.mxu0 0
      %241 = vmatpush1.bf16.msra.mxu0 0
      %242 = vmatprep.subr.bf16.mxu0 0
      %243 = vmatpush1.bf16.msra.mxu0 0
      %244 = vmatprep.subr.bf16.mxu0 0
      %245 = vmatpush1.bf16.msra.mxu0 0
      %246 = vmatprep.subr.bf16.mxu0 0
      %247 = vmatpush1.bf16.msra.mxu0 0
      %248 = vmatprep.subr.bf16.mxu0 0
      %249 = vmatpush1.bf16.msra.mxu0 0
      %250 = vmatprep.subr.bf16.mxu0 0
      %251 = vmatpush1.bf16.msra.mxu0 0
      %252 = vmatprep.subr.bf16.mxu0 0
      %253 = vmatpush1.bf16.msra.mxu0 0
      %254 = vmatprep.subr.bf16.mxu0 0
      %255 = vmatpush1.bf16.msra.mxu0 0
      %256 = vmatprep.subr.bf16.mxu0 0
      %257 = vmatpush1.bf16.msra.mxu0 0
      %258 = vmatprep.subr.bf16.mxu0 0
      %259 = vmatpush1.bf16.msra.mxu0 0
      %260 = vmatprep.subr.bf16.mxu0 0
      %261 = vmatpush1.bf16.msra.mxu0 0
      %262 = vmatprep.mubr.bf16.mxu0 0
      %263 = vmatmul.mubr.bf16.gmra.mrb[0].mxu0 %v228
      %v264 = vpop.f32.mrb[0].mxu0
      %v265 = vadd.f32 0.0, %v264
      %v266 = vpop.f32.mrb[0].mxu0
      %v267 = vpop.f32.mrb[0].mxu0
      %v268 = vadd.f32 0.0, %v267
      %v269 = vpop.f32.mrb[0].mxu0
      %270 = vdwg.mxu0
      %v271 = vpack.c.bf16 %v268, %v265
      %v273 = vunpack.c.l.b16 %v271
      %v274 = vunpack.c.h.b16 %v271
      %v275 = vpack.c.b16 %v273, %v273
      %v276 = vpack.c.b16 %v274, %v274
      %279 = vst [vmem:[#allocation6] sm:$0xf] %v275
      %280 = vst [vmem:[#allocation6 + $0x4] sm:$0xf] %v276
    $region33: #{tpu_custom_call.1} parent=1 // pred_fallthru
      _
    // Predicated region
    $region34: #{tpu_custom_call.1} parent=1 // pred_check
      _
    $region35: #{tpu_custom_call.1} parent=1 // pred_check_branch
      %282 = sbr.rel (0) target = $region37
    $region36: #{tpu_custom_call.1} parent=1 // pred_region
      %s284 = ssub.s32 128, 128
      %285 = vsyncadd [#allocation5], %s284
      %s286 = sshll.u32 [#allocation6], 4
      %s287 = int_to_ptr.vmem [resolvable:$true] %s286
      %292 = dma.vmem_to_hbm [thread:$0]  %s287, 128, %s5, [#allocation5], 64, 64, 4
    $region37: #{tpu_custom_call.1} parent=1 // pred_fallthru
      _
    // Predicated region
    $region38: #{tpu_custom_call.1} parent=1 // pred_check
      _
    $region39: #{tpu_custom_call.1} parent=1 // pred_check_branch
      %294 = sbr.rel (0) target = $region41
    $region40: #{tpu_custom_call.1} parent=1 // pred_region
      %295 = dma.done [#allocation5], 128
    $region41: #{tpu_custom_call.1} parent=1 // pred_fallthru
      _
    %296 = vsyncpa [#allocation4], 1
    %297 = vsyncpa [#allocation5], 1

</llo_original>
